<compile_context>
chip_gen: v6e
topology: v6e:2x2x1
jax: 0.10.0
libtpu: 0.0.40
codegen_flags: <defaults>
</compile_context>

<pallas_src>
import jax
import jax.numpy as jnp
from jax.experimental import pallas as pl
from jax.experimental.pallas import tpu as pltpu


# Below this many FLOPs a fused XLA dot beats any custom kernel.
_FAST_PATH_FLOPS = 1 << 21  # ~2 MFLOP


def _round_up(x: int, m: int) -> int:
    return ((x + m - 1) // m) * m


def _cdiv(a: int, b: int) -> int:
    return -(-a // b)


def _largest_aligned_divisor(dim: int, cap: int, align: int) -> int:
    """Largest multiple of `align` that divides `dim` and is <= cap.
    Assumes `align` divides `dim`."""
    cap = max(align, (cap // align) * align)
    for t in range(cap, align - 1, -align):
        if dim % t == 0:
            return t
    return align


def _choose_tile(dim: int, cap: int, align: int):
    """Pick (tile, padded_dim) for one axis.

    Prefers a tile that divides the align-rounded dim exactly (zero padding
    waste); falls back to padding `dim` up to a multiple of `cap` only if the
    exact divisor would explode the grid-step count."""
    if dim <= cap:
        return dim, dim  # whole axis in a single block (no alignment needed)
    cap = max(align, (cap // align) * align)
    aligned = _round_up(dim, align)
    tile = _largest_aligned_divisor(aligned, cap, align)
    if aligned // tile > 4 * _cdiv(aligned, cap):
        tile = cap
        aligned = _round_up(dim, cap)
    return tile, aligned


def _tile_budget():
    """Per-generation f32 tile caps (max_tm, max_tn, max_tk, vmem_capacity)."""
    vmem_cap = 64 << 20  # conservative default: v7x has 64 MiB per TensorCore
    try:
        vmem_cap = int(getattr(pltpu.get_tpu_info(), "vmem_capacity_bytes", vmem_cap))
    except Exception:  # interpret mode / older runtimes
        pass
    if vmem_cap >= (100 << 20):  # v5e / v6e: 128 MiB physical VMEM
        return 1024, 512, 2048, vmem_cap
    return 512, 512, 1024, vmem_cap  # v7x-safe (~10 MiB double-buffered)


def _linear_kernel(x_ref, wt_ref, b_ref, o_ref):
    """One (tm, tn) output tile; the K reduction is streamed along grid axis 2.

    x_ref : (tm, tk)  activation tile
    wt_ref: (tk, tn)  pre-transposed weight tile (input_dim, num_classes)
    b_ref : (1,  tn)  bias tile (resident across i and k)
    o_ref : (tm, tn)  f32 output tile; its BlockSpec ignores k, so it stays
                      VMEM-resident across the K axis and doubles as the
                      accumulator (bias folded into the k == 0 init).
    """
    @pl.when(pl.program_id(2) == 0)
    def _init():
        o_ref[...] = jnp.broadcast_to(b_ref[...], o_ref.shape).astype(o_ref.dtype)

    o_ref[...] += jnp.dot(x_ref[...], wt_ref[...],
                          preferred_element_type=jnp.float32)


def prepare_classifier_head_params(weight, bias, *, param_dtype=jnp.float32,
                                   max_tile_k=None):
    """One-time conversion of torch.nn.Linear parameters to the kernel layout.

    weight: (num_classes, input_dim), bias: (num_classes,)

    Returns (w_t, bias2d, num_classes):
      w_t    : (k_pad, n_pad) = weight.T zero-padded.  N is padded to a
               multiple of 128 (lane-dense unmasked stores); K is padded only
               when it will be tiled (input_dim > max K tile).  Optionally
               cast to `param_dtype` (e.g. bfloat16 to halve weight HBM
               traffic; accumulation stays f32).
      bias2d : (1, n_pad) float32.

    Doing the pad/transpose here instead of per forward call avoids a full
    HBM copy of the weight on every call.
    """
    num_classes, input_dim = weight.shape
    assert bias.shape == (num_classes,)
    if max_tile_k is None:
        _, _, max_tile_k, _ = _tile_budget()

    n_pad = _round_up(num_classes, 128)
    if input_dim <= max_tile_k:
        k_pad = input_dim  # whole-K block: no alignment requirement, no pad
    else:
        _, k_pad = _choose_tile(input_dim, max_tile_k, 128)

    w_t = jnp.pad(weight.T.astype(param_dtype),
                  ((0, k_pad - input_dim), (0, n_pad - num_classes)))
    bias2d = jnp.pad(bias.astype(jnp.float32),
                     ((0, n_pad - num_classes),)).reshape(1, n_pad)
    return w_t, bias2d, num_classes


def classifier_head_forward(x, w_t, bias2d, num_classes, *,
                            tile_m=None, tile_n=None, tile_k=None,
                            force_pallas=False):
    """Pallas implementation of ClassifierHead.forward.

    x      : (batch, input_dim) activations
    w_t    : (k_pad, n_pad)     prepared weight (see prepare_classifier_head_params)
    bias2d : (1, n_pad)         prepared bias
    returns: (batch, num_classes) float32
    """
    batch, x_k = x.shape
    k_pad, n_pad = w_t.shape
    assert x_k <= k_pad, "x feature dim larger than prepared weight"
    assert bias2d.shape == (1, n_pad)
    assert num_classes <= n_pad

    # Tiny-problem fast path: for a few-thousand-FLOP GEMV the pad/slice copies
    # and kernel-launch overhead dominate; XLA's fused dot is strictly faster.
    if not force_pallas and 2 * batch * x_k * num_classes < _FAST_PATH_FLOPS:
        y = jnp.dot(x.astype(jnp.float32), w_t[:x_k, :].astype(jnp.float32))
        y = y + bias2d
        return y[:, :num_classes]

    max_tm, max_tn, max_tk, vmem_cap = _tile_budget()
    max_tm = tile_m or max_tm
    max_tn = tile_n or max_tn
    max_tk = tile_k or max_tk

    # K: fixed by the prepared weight (prepare() only pads K when it is tiled).
    if k_pad <= max_tk or k_pad % 128 != 0:
        tk = k_pad
    else:
        tk = _largest_aligned_divisor(k_pad, max_tk, 128)

    # N: prepare() padded num_classes to a multiple of 128 (lane-dense stores).
    tn = n_pad if n_pad <= max_tn else _largest_aligned_divisor(n_pad, max_tn, 128)

    # M: whole batch in one block if it fits, else 8-aligned divisor tiles.
    tm, m_pad = _choose_tile(batch, max_tm, 8)

    # Keep both v7x TensorCores busy: if the whole problem is a single (i, j)
    # block and N is large, split along N (harmless on 1-TC v5e/v6e).
    if m_pad // tm == 1 and n_pad // tn == 1 and n_pad >= 512:
        tn = _largest_aligned_divisor(n_pad, tn // 2, 128)

    # Per-call padding of the activation only (weight was padded once at prep).
    if x.dtype != w_t.dtype:
        x = x.astype(w_t.dtype)
    if (m_pad, k_pad) != (batch, x_k):
        x = jnp.pad(x, ((0, m_pad - batch), (0, k_pad - x_k)))

    grid = (m_pad // tm, n_pad // tn, k_pad // tk)

    x_bytes = x.dtype.itemsize
    w_bytes = w_t.dtype.itemsize
    vmem_needed = 2 * (tm * tk * x_bytes + tk * tn * w_bytes + tm * tn * 4 + tn * 4)
    vmem_limit = None
    if vmem_needed > (12 << 20):
        vmem_limit = min(int(vmem_needed * 1.5),
                         max(vmem_needed, vmem_cap - (8 << 20)))

    cost = pl.CostEstimate(
        flops=2 * m_pad * n_pad * k_pad,
        transcendentals=0,
        bytes_accessed=(m_pad * k_pad * x_bytes
                        + (m_pad // tm) * k_pad * n_pad * w_bytes
                        + m_pad * n_pad * 4),
    )

    out = pl.pallas_call(
        _linear_kernel,
        out_shape=jax.ShapeDtypeStruct((m_pad, n_pad), jnp.float32),
        grid=grid,
        in_specs=[
            pl.BlockSpec((tm, tk), lambda i, j, k: (i, k)),   # x
            pl.BlockSpec((tk, tn), lambda i, j, k: (k, j)),   # W^T (pre-transposed)
            pl.BlockSpec((1, tn), lambda i, j, k: (0, j)),    # bias
        ],
        out_specs=pl.BlockSpec((tm, tn), lambda i, j, k: (i, j)),
        compiler_params=pltpu.CompilerParams(
            dimension_semantics=("parallel", "parallel", "arbitrary"),
            vmem_limit_bytes=vmem_limit,
        ),
        cost_estimate=cost,
    )(x, w_t, bias2d)

    if (m_pad, n_pad) != (batch, num_classes):
        out = out[:batch, :num_classes]
    return out


def init_classifier_head_params(key, input_dim, num_classes=1):
    """Deterministic init mimicking torch.nn.Linear (uniform +/- 1/sqrt(fan_in))."""
    k_w, k_b = jax.random.split(key)
    bound = 1.0 / jnp.sqrt(jnp.float32(input_dim))
    weight = jax.random.uniform(
        k_w, (num_classes, input_dim), dtype=jnp.float32, minval=-bound, maxval=bound
    )
    bias = jax.random.uniform(
        k_b, (num_classes,), dtype=jnp.float32, minval=-bound, maxval=bound
    )
    return weight, bias


if __name__ == "__main__":
    key = jax.random.PRNGKey(0)
    k_x, k_p, k_x2, k_p2 = jax.random.split(key, 4)

    # Case 1: the module's literal configuration (input_dim=32 -> num_classes=1).
    batch, input_dim, num_classes = 8, 32, 1
    x = jax.random.normal(k_x, (batch, input_dim), dtype=jnp.float32)
    weight, bias = init_classifier_head_params(k_p, input_dim, num_classes)
    w_t, b2d, n_cls = prepare_classifier_head_params(weight, bias)

    out = classifier_head_forward(x, w_t, b2d, n_cls, force_pallas=True)
    out = jax.block_until_ready(out)
    ref = x @ weight.T + bias
    assert out.shape == (batch, num_classes)
    assert jnp.allclose(out, ref, atol=1e-5, rtol=1e-5)

    # The dispatch the wrapper would actually pick for this tiny problem.
    out_fast = jax.block_until_ready(classifier_head_forward(x, w_t, b2d, n_cls))
    assert out_fast.shape == (batch, num_classes)
    assert jnp.allclose(out_fast, ref, atol=1e-5, rtol=1e-5)

    # Case 2: slightly larger head exercising N padding to the 128-lane tile.
    batch2, input_dim2, num_classes2 = 64, 256, 10
    x2 = jax.random.normal(k_x2, (batch2, input_dim2), dtype=jnp.float32)
    weight2, bias2 = init_classifier_head_params(k_p2, input_dim2, num_classes2)
    w_t2, b2d2, n_cls2 = prepare_classifier_head_params(weight2, bias2)
    out2 = jax.block_until_ready(
        classifier_head_forward(x2, w_t2, b2d2, n_cls2, force_pallas=True))
    ref2 = x2 @ weight2.T + bias2
    assert out2.shape == (batch2, num_classes2)
    assert jnp.allclose(out2, ref2, atol=1e-4, rtol=1e-4)

    print("KERNEL_OK")
</pallas_src>

<mosaic_0001>
module attributes {stable_mosaic.version = 11 : i64} {
  func.func @_linear_kernel(%arg0: i32, %arg1: i32, %arg2: i32, %arg3: memref<8x32xf32, #tpu.memory_space<vmem>>, %arg4: memref<32x128xf32, #tpu.memory_space<vmem>>, %arg5: memref<1x128xf32, #tpu.memory_space<vmem>>, %arg6: memref<8x128xf32, #tpu.memory_space<vmem>>) attributes {dimension_semantics = [#tpu.dimension_semantics<parallel>, #tpu.dimension_semantics<parallel>, #tpu.dimension_semantics<arbitrary>], iteration_bounds = array<i64: 1, 1, 1>, scalar_prefetch = 0 : i64, scratch_operands = 0 : i64, tpu.core_type = #tpu.core_type<tc>, window_params = [{transform_indices = @transform_0, window_bounds = array<i64: 8, 32>}, {transform_indices = @transform_1, window_bounds = array<i64: 32, 128>}, {transform_indices = @transform_2, window_bounds = array<i64: 1, 128>}, {transform_indices = @transform_3, window_bounds = array<i64: 8, 128>}]} {
    %c0_i32 = arith.constant 0 : i32
    %0 = arith.cmpi eq, %arg2, %c0_i32 : i32
    %1 = arith.extui %0 : i1 to i32
    %c0_i32_0 = arith.constant 0 : i32
    %2 = arith.cmpi ne, %1, %c0_i32_0 : i32
    scf.if %2 {
      %c0_8 = arith.constant 0 : index
      %c0_9 = arith.constant 0 : index
      %9 = vector.load %arg5[%c0_8, %c0_9] : memref<1x128xf32, #tpu.memory_space<vmem>>, vector<1x128xf32>
      %10 = vector.shape_cast %9 : vector<1x128xf32> to vector<1x128xf32>
      %11 = vector.broadcast %10 : vector<1x128xf32> to vector<8x128xf32>
      %c0_10 = arith.constant 0 : index
      %c0_11 = arith.constant 0 : index
      %12 = vector.load %arg6[%c0_10, %c0_11] : memref<8x128xf32, #tpu.memory_space<vmem>>, vector<8x128xf32>
      tpu.vector_store %arg6[%c0_10, %c0_11], %11 {strides = array<i32>} : memref<8x128xf32, #tpu.memory_space<vmem>>, vector<8x128xf32>,
    } else {
    }
    %c0 = arith.constant 0 : index
    %c0_1 = arith.constant 0 : index
    %3 = vector.load %arg6[%c0, %c0_1] : memref<8x128xf32, #tpu.memory_space<vmem>>, vector<8x128xf32>
    %c0_2 = arith.constant 0 : index
    %c0_3 = arith.constant 0 : index
    %4 = vector.load %arg3[%c0_2, %c0_3] : memref<8x32xf32, #tpu.memory_space<vmem>>, vector<8x32xf32>
    %c0_4 = arith.constant 0 : index
    %c0_5 = arith.constant 0 : index
    %5 = vector.load %arg4[%c0_4, %c0_5] : memref<32x128xf32, #tpu.memory_space<vmem>>, vector<32x128xf32>
    %cst = arith.constant dense<0.000000e+00> : vector<8x128xf32>
    %6 = tpu.matmul %4, %5, %cst {dimension_numbers = #tpu.dot_dimension_numbers<[1], [0], [0], [1], [0, 0, 1, 1], [], []>} : vector<8x32xf32>, vector<32x128xf32>, vector<8x128xf32> -> vector<8x128xf32>
    %7 = arith.addf %3, %6 : vector<8x128xf32>
    %c0_6 = arith.constant 0 : index
    %c0_7 = arith.constant 0 : index
    %8 = vector.load %arg6[%c0_6, %c0_7] : memref<8x128xf32, #tpu.memory_space<vmem>>, vector<8x128xf32>
    tpu.vector_store %arg6[%c0_6, %c0_7], %7 {strides = array<i32>} : memref<8x128xf32, #tpu.memory_space<vmem>>, vector<8x128xf32>,
    return
  }
  func.func @transform_0(%arg0: i32, %arg1: i32, %arg2: i32) -> (i32, i32) {
    %c0_i32 = arith.constant 0 : i32
    return %arg0, %arg2 : i32, i32
  }
  func.func @transform_1(%arg0: i32, %arg1: i32, %arg2: i32) -> (i32, i32) {
    %c0_i32 = arith.constant 0 : i32
    return %arg2, %arg1 : i32, i32
  }
  func.func @transform_2(%arg0: i32, %arg1: i32, %arg2: i32) -> (i32, i32) {
    %c0_i32 = arith.constant 0 : i32
    %c0_i32_0 = arith.constant 0 : i32
    return %c0_i32, %arg1 : i32, i32
  }
  func.func @transform_3(%arg0: i32, %arg1: i32, %arg2: i32) -> (i32, i32) {
    %c0_i32 = arith.constant 0 : i32
    return %arg0, %arg1 : i32, i32
  }
}

</mosaic_0001>

<llo_original>
// kernel: tpu_custom_call.1
$region0: #{tpu_custom_call.1}
  #allocation0 [shape = 'u32[]', space=smem, size = 0x4, offset = 0x4, fixed_abs, tag = 'smem constant byte address 0x4 - core index']
  #allocation1 [shape = 'u32[144,128]{1,0:T(1,128)}', space=vmem, size = 0x12000, scoped, tag = 'internal scratch']
  %s0 = inlined_call_operand.hbm [shape: f32[8,32], index: 0, kind: input, shape index: {}]
  %s1 = inlined_call_operand.hbm [shape: f32[32,128], index: 1, kind: input, shape index: {}]
  %s2 = inlined_call_operand.vmem [shape: f32[1,128], index: 2, kind: input, shape index: {}]
  %s3 = inlined_call_operand.hbm [shape: f32[8,128], index: 3, kind: output, shape index: {}]
  %s4 = sld [smem:[#allocation0]]
  $region34: #{tpu_custom_call.1} parent=0
    _
  %s6 = ssub.s32 1, %s4
  %s7 = scalar_select 0, %s6, %s4
  $region1: #{tpu_custom_call.1} parent=0
    #allocation2 [shape = 'u8[4096]{0}', space=vmem, size = 0x1000, scoped, tag = 'input window, operand 0, single buffered']
    #allocation3 [shape = 's32[1]{0}', space=sflag, size = 0x4, scoped, tag = 'scoped memory for tpu_custom_call.1']
    #allocation4 [shape = 's32[1]{0}', space=sflag, size = 0x4, scoped, tag = 'scoped memory for tpu_custom_call.1']
    #allocation5 [shape = 'u8[16384]{0}', space=vmem, size = 0x4000, scoped, tag = 'input window, operand 1, single buffered']
    #allocation6 [shape = 's32[1]{0}', space=sflag, size = 0x4, scoped, tag = 'scoped memory for tpu_custom_call.1']
    #allocation7 [shape = 'u8[4096]{0}', space=vmem, size = 0x1000, scoped, tag = 'output window, operand 0, single buffered']
    %8 = vsyncpa [#allocation3], 0
    %9 = vsyncpa [#allocation6], 0
    %10 = vsyncpa [#allocation4], 0
    // Predicated region
    $region2: #{tpu_custom_call.1} parent=1 // pred_check
      _
    $region3: #{tpu_custom_call.1} parent=1 // pred_check_branch
      %12 = sbr.rel (0) target = $region5
    $region4: #{tpu_custom_call.1} parent=1 // pred_region
      %s14 = ssub.s32 128, 128
      %15 = vsyncadd [#allocation3], %s14
      %s17 = sshll.u32 [#allocation2], 4
      %s18 = int_to_ptr.vmem [resolvable:$true] %s17
      %20 = dma.hbm_to_vmem [thread:$0]  %s0, 128, %s18, [#allocation3]
    $region5: #{tpu_custom_call.1} parent=1 // pred_fallthru
      _
    // Predicated region
    $region6: #{tpu_custom_call.1} parent=1 // pred_check
      _
    $region7: #{tpu_custom_call.1} parent=1 // pred_check_branch
      %22 = sbr.rel (0) target = $region9
    $region8: #{tpu_custom_call.1} parent=1 // pred_region
      %s24 = ssub.s32 512, 512
      %25 = vsyncadd [#allocation6], %s24
      %s26 = sshll.u32 [#allocation5], 4
      %s27 = int_to_ptr.vmem [resolvable:$true] %s26
      %32 = dma.hbm_to_vmem [thread:$0]  %s1, 512, %s27, [#allocation6], 128, 128, 8
    $region9: #{tpu_custom_call.1} parent=1 // pred_fallthru
      _
    // Predicated region
    $region10: #{tpu_custom_call.1} parent=1 // pred_check
      _
    $region11: #{tpu_custom_call.1} parent=1 // pred_check_branch
      %34 = sbr.rel (0) target = $region13
    $region12: #{tpu_custom_call.1} parent=1 // pred_region
      _
    $region13: #{tpu_custom_call.1} parent=1 // pred_fallthru
      _
    // Predicated region
    $region14: #{tpu_custom_call.1} parent=1 // pred_check
      _
    $region15: #{tpu_custom_call.1} parent=1 // pred_check_branch
      %36 = sbr.rel (0) target = $region17
    $region16: #{tpu_custom_call.1} parent=1 // pred_region
      %37 = dma.done [#allocation3], 128
    $region17: #{tpu_custom_call.1} parent=1 // pred_fallthru
      _
    // Predicated region
    $region18: #{tpu_custom_call.1} parent=1 // pred_check
      _
    $region19: #{tpu_custom_call.1} parent=1 // pred_check_branch
      %39 = sbr.rel (0) target = $region21
    $region20: #{tpu_custom_call.1} parent=1 // pred_region
      %40 = dma.done [#allocation6], 512
    $region21: #{tpu_custom_call.1} parent=1 // pred_fallthru
      _
    %p41 = scmp.eq.s32.totalorder 0, 0
    // Predicated region
    $region22: #{tpu_custom_call.1} parent=1 // pred_check
      %p42 = pneg %p41
    $region23: #{tpu_custom_call.1} parent=1 // pred_check_branch
      %44 = sbr.rel (%p42) target = $region25
    $region24: #{tpu_custom_call.1} parent=1 // pred_region
      %v45 = vld [vmem:[%s2] sm:$0x1]
      %v47 = vlaneseq
      %v48 = vshrl.u32 %v47, 7
      %v49 = vsub.s32 0, %v48
      %v50 = vrot.slane %v45, %v49
      %52 = vst [vmem:[#allocation7] sm:$0xff] %v50
    $region25: #{tpu_custom_call.1} parent=1 // pred_fallthru
      _
    %v53 = vld [vmem:[#allocation7] sm:$0xff]
    %v54 = vld [vmem:[#allocation2] sm:$0xff]
    %v55 = vld [vmem:[#allocation5] sm:$0xff]
    %v56 = vld [vmem:[#allocation5 + $0x8] sm:$0xff]
    %v57 = vld [vmem:[#allocation5 + $0x10] sm:$0xff]
    %v58 = vld [vmem:[#allocation5 + $0x18] sm:$0xff]
    %vm59 = vcmask 261120
    %v61 = vsel %vm59, %v54, 0
    %63 = vmatprep.subr.mxu0 0.0
    %64 = vmatpush1.msra.mxu0 0.0
    %65 = vmatprep.subr.mxu0 0.0
    %66 = vmatpush1.msra.mxu0 0.0
    %67 = vmatprep.subr.mxu0 0.0
    %68 = vmatpush1.msra.mxu0 0.0
    %69 = vmatprep.subr.mxu0 0.0
    %70 = vmatpush1.msra.mxu0 0.0
    %71 = vmatprep.subr.mxu0 0.0
    %72 = vmatpush1.msra.mxu0 0.0
    %73 = vmatprep.subr.mxu0 0.0
    %74 = vmatpush1.msra.mxu0 0.0
    %75 = vmatprep.subr.mxu0 0.0
    %76 = vmatpush1.msra.mxu0 0.0
    %77 = vmatprep.subr.mxu0 0.0
    %78 = vmatpush1.msra.mxu0 0.0
    %79 = vmatprep.subr.mxu0 0.0
    %80 = vmatpush1.msra.mxu0 0.0
    %81 = vmatprep.subr.mxu0 0.0
    %82 = vmatpush1.msra.mxu0 0.0
    %83 = vmatprep.subr.mxu0 0.0
    %84 = vmatpush1.msra.mxu0 0.0
    %85 = vmatprep.subr.mxu0 0.0
    %86 = vmatpush1.msra.mxu0 0.0
    %87 = vmatprep.subr.mxu0 0.0
    %88 = vmatpush1.msra.mxu0 %v58
    %89 = vmatprep.subr.mxu0 0.0
    %90 = vmatpush1.msra.mxu0 %v57
    %91 = vmatprep.subr.mxu0 0.0
    %92 = vmatpush1.msra.mxu0 %v56
    %93 = vmatprep.subr.mxu0 0.0
    %94 = vmatpush1.msra.mxu0 %v55
    %95 = vmatprep.subr.mxu0 0.0
    %96 = vmatpush2.msra.mxu0 0.0
    %97 = vmatprep.subr.mxu0 0.0
    %98 = vmatpush2.msra.mxu0 0.0
    %99 = vmatprep.subr.mxu0 0.0
    %100 = vmatpush2.msra.mxu0 0.0
    %101 = vmatprep.subr.mxu0 0.0
    %102 = vmatpush2.msra.mxu0 0.0
    %103 = vmatprep.subr.mxu0 0.0
    %104 = vmatpush2.msra.mxu0 0.0
    %105 = vmatprep.subr.mxu0 0.0
    %106 = vmatpush2.msra.mxu0 0.0
    %107 = vmatprep.subr.mxu0 0.0
    %108 = vmatpush2.msra.mxu0 0.0
    %109 = vmatprep.subr.mxu0 0.0
    %110 = vmatpush2.msra.mxu0 0.0
    %111 = vmatprep.subr.mxu0 0.0
    %112 = vmatpush2.msra.mxu0 0.0
    %113 = vmatprep.subr.mxu0 0.0
    %114 = vmatpush2.msra.mxu0 0.0
    %115 = vmatprep.subr.mxu0 0.0
    %116 = vmatpush2.msra.mxu0 0.0
    %117 = vmatprep.subr.mxu0 0.0
    %118 = vmatpush2.msra.mxu0 0.0
    %119 = vmatprep.subr.mxu0 0.0
    %120 = vmatpush2.msra.mxu0 0.0
    %121 = vmatprep.subr.mxu0 0.0
    %122 = vmatpush2.msra.mxu0 0.0
    %123 = vmatprep.subr.mxu0 0.0
    %124 = vmatpush2.msra.mxu0 0.0
    %125 = vmatprep.subr.mxu0 0.0
    %126 = vmatpush2.msra.mxu0 0.0
    %127 = vmatprep.mubr.f32.mxu0 0.0
    %128 = vmatmul.mubr.f32.gmra.mxu0 %v61
    %v129 = vpop.f32.mrf.mxu0
    %v130 = vadd.f32 0.0, %v129
    %v131 = vpop.f32.mrf.mxu0
    %132 = vdwg.mxu0
    %v133 = vadd.f32 %v53, %v130
    %134 = vst [vmem:[#allocation7] sm:$0xff] %v133
    // Predicated region
    $region26: #{tpu_custom_call.1} parent=1 // pred_check
      _
    $region27: #{tpu_custom_call.1} parent=1 // pred_check_branch
      %136 = sbr.rel (0) target = $region29
    $region28: #{tpu_custom_call.1} parent=1 // pred_region
      %s138 = ssub.s32 128, 128
      %139 = vsyncadd [#allocation4], %s138
      %s141 = sshll.u32 [#allocation7], 4
      %s142 = int_to_ptr.vmem [resolvable:$true] %s141
      %144 = dma.vmem_to_hbm [thread:$0]  %s142, 128, %s3, [#allocation4]
    $region29: #{tpu_custom_call.1} parent=1 // pred_fallthru
      _
    // Predicated region
    $region30: #{tpu_custom_call.1} parent=1 // pred_check
      _
    $region31: #{tpu_custom_call.1} parent=1 // pred_check_branch
      %146 = sbr.rel (0) target = $region33
    $region32: #{tpu_custom_call.1} parent=1 // pred_region
      %147 = dma.done [#allocation4], 128
    $region33: #{tpu_custom_call.1} parent=1 // pred_fallthru
      _
    %148 = vsyncpa [#allocation3], 1
    %149 = vsyncpa [#allocation6], 1
    %150 = vsyncpa [#allocation4], 1

</llo_original>
